<compile_context>
chip_gen: v6e
topology: v6e:2x2x1
jax: 0.10.0
libtpu: 0.0.40
codegen_flags: <defaults>
</compile_context>

<pallas_src>
import jax
import jax.numpy as jnp
from jax.experimental import pallas as pl
from jax.experimental.pallas import tpu as pltpu


def _round_up(x, m):
    return (x + m - 1) // m * m


def _mlp_kernel(x_ref, w1_ref, b1_ref, w3_ref, b3_ref, w4_ref, b4_ref, o_ref):
    # x arrives f32 straight from HBM; cast to the MXU compute dtype in VMEM
    # (avoids a wrapper-side bf16 copy of x -> half the end-to-end HBM traffic
    # for the dominant input).
    x = x_ref[...].astype(w1_ref.dtype)

    # Stage 1: fc1 + ReLU   (dropout is identity in eval mode)
    h1 = jnp.dot(x, w1_ref[...], preferred_element_type=jnp.float32)
    h1 = jnp.maximum(h1 + b1_ref[...], 0.0)

    # Stage 2: fc3 + ReLU
    h2 = jnp.dot(h1.astype(w3_ref.dtype), w3_ref[...],
                 preferred_element_type=jnp.float32)
    h2 = jnp.maximum(h2 + b3_ref[...], 0.0)

    # Stage 3: fc4 + ReLU
    h3 = jnp.dot(h2.astype(w4_ref.dtype), w4_ref[...],
                 preferred_element_type=jnp.float32)
    h3 = jnp.maximum(h3 + b4_ref[...], 0.0)

    o_ref[...] = h3.astype(o_ref.dtype)
    # TODO(synk): training-mode dropout (p=0.5) not implemented; this kernel
    # reproduces the module's eval/inference forward pass only.
    # TODO(synk): output_dim=8 gives lane-sparse (masked) stores; an in-kernel
    # repack to a lane-dense slab is skipped -- the bf16 output already makes
    # writeback bytes negligible vs. the f32 x read.


def lstm_mlp_forward(x, params, *, block_batch=None, out_dtype=jnp.bfloat16):
    """Fused MLP forward.

    x: (B, input_dim), float32 (cast to bf16 inside the kernel).
    params: dict from `prepare_params` (weights already transposed to
    (in, out) and stored in bf16; biases f32).
    """
    B, in_dim = x.shape
    w1, b1 = params["w1"], params["b1"]   # (in, 2h),   (1, 2h)
    w3, b3 = params["w3"], params["b3"]   # (2h, h//2), (1, h//2)
    w4, b4 = params["w4"], params["b4"]   # (h//2, out),(1, out)
    h1_dim, h2_dim, out_dim = w1.shape[1], w3.shape[1], w4.shape[1]

    # --- batch tile: multiple of 8 sublanes. The MXU is <10% utilized at
    # these K/N sizes regardless of tb, so tb is chosen purely to amortize the
    # ~0.35us per-grid-step overhead while keeping >=2 steps (feeds both v7x
    # TensorCores) and the double-buffered pipeline small in VMEM.
    if block_batch is not None:
        tb = max(8, _round_up(min(block_batch, max(B, 1)), 8))
    elif B <= 16:
        tb = _round_up(max(B, 1), 8)
    else:
        tb = min(4096, _round_up(-(-B // 2), 8))

    # No jnp.pad: let Pallas handle the ragged tail block (output rows past B
    # are masked on writeback; garbage tail rows in the input tile are
    # harmless since there is no cross-row reduction).
    grid = (pl.cdiv(B, tb),)

    xbytes = jnp.dtype(x.dtype).itemsize
    obytes = jnp.dtype(out_dtype).itemsize

    # --- VMEM budget (lane padding to 128 accounted; x/out tiles double
    # buffered by the pipeline, params charged 2x as well since they are
    # default double-buffered even though their index_map is constant).
    def lane_bytes(rows, cols, itemsize):
        return _round_up(rows, 8) * _round_up(cols, 128) * itemsize

    param_tiles = (w1, w3, w4, b1, b3, b4)
    est = (2 * lane_bytes(tb, in_dim, xbytes)          # x tile (f32), dbl buf
           + 2 * lane_bytes(tb, out_dim, obytes)       # out tile, dbl buf
           + lane_bytes(tb, h1_dim, 4)                 # h1 (f32)
           + lane_bytes(tb, h2_dim, 4)                 # h2 (f32)
           + 2 * sum(lane_bytes(a.shape[0], a.shape[1],
                                jnp.dtype(a.dtype).itemsize)
                     for a in param_tiles))            # resident params
    vmem_limit = int(min(max(2 * est + (4 << 20), 8 << 20), 64 << 20))

    # --- cost estimate for the XLA scheduler (kernel is memory bound).
    flops = 2 * B * (in_dim * h1_dim + h1_dim * h2_dim + h2_dim * out_dim)
    param_bytes = sum(int(a.size) * jnp.dtype(a.dtype).itemsize
                      for a in param_tiles)
    bytes_accessed = B * in_dim * xbytes + B * out_dim * obytes + param_bytes

    # Whole weight matrices are tiny; keep them resident (same block each step).
    rep = lambda arr: pl.BlockSpec(arr.shape, lambda i: (0, 0))

    out = pl.pallas_call(
        _mlp_kernel,
        out_shape=jax.ShapeDtypeStruct((B, out_dim), out_dtype),
        grid_spec=pltpu.PrefetchScalarGridSpec(
            num_scalar_prefetch=0,
            grid=grid,
            in_specs=[
                pl.BlockSpec((tb, in_dim), lambda i: (i, 0)),   # x tile over batch
                rep(w1), rep(b1),
                rep(w3), rep(b3),
                rep(w4), rep(b4),
            ],
            out_specs=pl.BlockSpec((tb, out_dim), lambda i: (i, 0)),
        ),
        compiler_params=pltpu.CompilerParams(
            dimension_semantics=("parallel",),
            vmem_limit_bytes=vmem_limit),
        cost_estimate=pl.CostEstimate(
            flops=flops, transcendentals=0, bytes_accessed=bytes_accessed),
    )(x, w1, b1, w3, b3, w4, b4)

    return out


def init_params(key, input_dim, hidden_dim, output_dim, dtype=jnp.float32):
    """Deterministic parameter init mirroring nn.Linear shapes.
    PyTorch weight (out, in) is stored transposed as (in, out)."""
    dims = [
        (input_dim, hidden_dim * 2),        # fc1
        (hidden_dim * 2, hidden_dim // 2),  # fc3
        (hidden_dim // 2, output_dim),      # fc4
    ]
    names = ["1", "3", "4"]
    params = {}
    for name, (fan_in, fan_out) in zip(names, dims):
        key, kw, kb = jax.random.split(key, 3)
        bound = 1.0 / jnp.sqrt(jnp.float32(fan_in))
        params[f"w{name}"] = jax.random.uniform(
            kw, (fan_in, fan_out), dtype, minval=-bound, maxval=bound)
        params[f"b{name}"] = jax.random.uniform(
            kb, (1, fan_out), dtype, minval=-bound, maxval=bound)
    return params


def prepare_params(params, compute_dtype=jnp.bfloat16):
    """One-time conversion for the kernel: weights -> compute dtype (MXU
    operands), biases -> f32 (VPU bias-add / ReLU stay f32, incl. on v5e)."""
    out = {}
    for k, v in params.items():
        out[k] = v.astype(compute_dtype if k.startswith("w") else jnp.float32)
    return out


def _reference(x, params, compute_dtype=jnp.bfloat16):
    """Pure-JAX reference with the same bf16 rounding of the MXU inputs."""
    f32 = jnp.float32

    def stage(h, w, b):
        hw = jnp.dot(h.astype(compute_dtype).astype(f32),
                     w.astype(compute_dtype).astype(f32))
        return jnp.maximum(hw + b.astype(f32), 0.0)

    h = stage(x, params["w1"], params["b1"])
    h = stage(h, params["w3"], params["b3"])
    h = stage(h, params["w4"], params["b4"])
    return h


if __name__ == "__main__":
    input_dim, hidden_dim, output_dim = 16, 32, 8

    key = jax.random.PRNGKey(0)
    kx, kx2, kp = jax.random.split(key, 3)
    params = init_params(kp, input_dim, hidden_dim, output_dim)
    kparams = prepare_params(params)

    # Small case: single full tile (B = 8).
    batch = 8
    x = jax.random.normal(kx, (batch, input_dim), dtype=jnp.float32)
    out = jax.block_until_ready(lstm_mlp_forward(x, kparams))
    ref = _reference(x, params)
    assert out.shape == (batch, output_dim)
    assert out.dtype == jnp.bfloat16
    assert jnp.allclose(out.astype(jnp.float32), ref, atol=2e-2, rtol=2e-2)

    # Larger case: 2 grid steps with a ragged tail block (B=200 -> tb=104: 104+96).
    batch2 = 200
    x2 = jax.random.normal(kx2, (batch2, input_dim), dtype=jnp.float32)
    out2 = jax.block_until_ready(lstm_mlp_forward(x2, kparams))
    ref2 = _reference(x2, params)
    assert out2.shape == (batch2, output_dim)
    assert jnp.allclose(out2.astype(jnp.float32), ref2, atol=2e-2, rtol=2e-2)

    print("KERNEL_OK")
</pallas_src>

<mosaic_0001>
module attributes {stable_mosaic.version = 11 : i64} {
  func.func @_mlp_kernel(%arg0: i32, %arg1: memref<8x16xf32, #tpu.memory_space<vmem>>, %arg2: memref<16x64xbf16, #tpu.memory_space<vmem>>, %arg3: memref<1x64xf32, #tpu.memory_space<vmem>>, %arg4: memref<64x16xbf16, #tpu.memory_space<vmem>>, %arg5: memref<1x16xf32, #tpu.memory_space<vmem>>, %arg6: memref<16x8xbf16, #tpu.memory_space<vmem>>, %arg7: memref<1x8xf32, #tpu.memory_space<vmem>>, %arg8: memref<8x8xbf16, #tpu.memory_space<vmem>>) attributes {dimension_semantics = [#tpu.dimension_semantics<parallel>], iteration_bounds = array<i64: 1>, scalar_prefetch = 0 : i64, scratch_operands = 0 : i64, tpu.core_type = #tpu.core_type<tc>, window_params = [{transform_indices = @transform_0, window_bounds = array<i64: 8, 16>}, {pipeline_mode = #tpu.pipeline_mode<synchronous>, transform_indices = @transform_1, window_bounds = array<i64: 16, 64>}, {pipeline_mode = #tpu.pipeline_mode<synchronous>, transform_indices = @transform_2, window_bounds = array<i64: 1, 64>}, {pipeline_mode = #tpu.pipeline_mode<synchronous>, transform_indices = @transform_3, window_bounds = array<i64: 64, 16>}, {pipeline_mode = #tpu.pipeline_mode<synchronous>, transform_indices = @transform_4, window_bounds = array<i64: 1, 16>}, {pipeline_mode = #tpu.pipeline_mode<synchronous>, transform_indices = @transform_5, window_bounds = array<i64: 16, 8>}, {pipeline_mode = #tpu.pipeline_mode<synchronous>, transform_indices = @transform_6, window_bounds = array<i64: 1, 8>}, {transform_indices = @transform_7, window_bounds = array<i64: 8, 8>}]} {
    %c0 = arith.constant 0 : index
    %c0_0 = arith.constant 0 : index
    %0 = vector.load %arg1[%c0, %c0_0] : memref<8x16xf32, #tpu.memory_space<vmem>>, vector<8x16xf32>
    %1 = arith.truncf %0 : vector<8x16xf32> to vector<8x16xbf16>
    %c0_1 = arith.constant 0 : index
    %c0_2 = arith.constant 0 : index
    %2 = vector.load %arg2[%c0_1, %c0_2] : memref<16x64xbf16, #tpu.memory_space<vmem>>, vector<16x64xbf16>
    %cst = arith.constant dense<0.000000e+00> : vector<8x64xf32>
    %3 = tpu.matmul %1, %2, %cst {dimension_numbers = #tpu.dot_dimension_numbers<[1], [0], [0], [1], [0, 0, 1, 1], [], []>} : vector<8x16xbf16>, vector<16x64xbf16>, vector<8x64xf32> -> vector<8x64xf32>
    %c0_3 = arith.constant 0 : index
    %c0_4 = arith.constant 0 : index
    %4 = vector.load %arg3[%c0_3, %c0_4] : memref<1x64xf32, #tpu.memory_space<vmem>>, vector<1x64xf32>
    %5 = vector.broadcast %4 : vector<1x64xf32> to vector<8x64xf32>
    %6 = arith.addf %3, %5 : vector<8x64xf32>
    %cst_5 = arith.constant 0.000000e+00 : f32
    %7 = vector.broadcast %cst_5 : f32 to vector<8x64xf32>
    %8 = arith.maximumf %6, %7 : vector<8x64xf32>
    %9 = arith.truncf %8 : vector<8x64xf32> to vector<8x64xbf16>
    %c0_6 = arith.constant 0 : index
    %c0_7 = arith.constant 0 : index
    %10 = vector.load %arg4[%c0_6, %c0_7] : memref<64x16xbf16, #tpu.memory_space<vmem>>, vector<64x16xbf16>
    %cst_8 = arith.constant dense<0.000000e+00> : vector<8x16xf32>
    %11 = tpu.matmul %9, %10, %cst_8 {dimension_numbers = #tpu.dot_dimension_numbers<[1], [0], [0], [1], [0, 0, 1, 1], [], []>} : vector<8x64xbf16>, vector<64x16xbf16>, vector<8x16xf32> -> vector<8x16xf32>
    %c0_9 = arith.constant 0 : index
    %c0_10 = arith.constant 0 : index
    %12 = vector.load %arg5[%c0_9, %c0_10] : memref<1x16xf32, #tpu.memory_space<vmem>>, vector<1x16xf32>
    %13 = vector.broadcast %12 : vector<1x16xf32> to vector<8x16xf32>
    %14 = arith.addf %11, %13 : vector<8x16xf32>
    %cst_11 = arith.constant 0.000000e+00 : f32
    %15 = vector.broadcast %cst_11 : f32 to vector<8x16xf32>
    %16 = arith.maximumf %14, %15 : vector<8x16xf32>
    %17 = arith.truncf %16 : vector<8x16xf32> to vector<8x16xbf16>
    %c0_12 = arith.constant 0 : index
    %c0_13 = arith.constant 0 : index
    %18 = vector.load %arg6[%c0_12, %c0_13] : memref<16x8xbf16, #tpu.memory_space<vmem>>, vector<16x8xbf16>
    %cst_14 = arith.constant dense<0.000000e+00> : vector<8x8xf32>
    %19 = tpu.matmul %17, %18, %cst_14 {dimension_numbers = #tpu.dot_dimension_numbers<[1], [0], [0], [1], [0, 0, 1, 1], [], []>} : vector<8x16xbf16>, vector<16x8xbf16>, vector<8x8xf32> -> vector<8x8xf32>
    %c0_15 = arith.constant 0 : index
    %c0_16 = arith.constant 0 : index
    %20 = vector.load %arg7[%c0_15, %c0_16] : memref<1x8xf32, #tpu.memory_space<vmem>>, vector<1x8xf32>
    %21 = vector.broadcast %20 : vector<1x8xf32> to vector<8x8xf32>
    %22 = arith.addf %19, %21 : vector<8x8xf32>
    %cst_17 = arith.constant 0.000000e+00 : f32
    %23 = vector.broadcast %cst_17 : f32 to vector<8x8xf32>
    %24 = arith.maximumf %22, %23 : vector<8x8xf32>
    %25 = arith.truncf %24 : vector<8x8xf32> to vector<8x8xbf16>
    %c0_18 = arith.constant 0 : index
    %c0_19 = arith.constant 0 : index
    %26 = vector.load %arg8[%c0_18, %c0_19] : memref<8x8xbf16, #tpu.memory_space<vmem>>, vector<8x8xbf16>
    tpu.vector_store %arg8[%c0_18, %c0_19], %25 {strides = array<i32>} : memref<8x8xbf16, #tpu.memory_space<vmem>>, vector<8x8xbf16>,
    return
  }
  func.func @transform_0(%arg0: i32) -> (i32, i32) {
    %c0_i32 = arith.constant 0 : i32
    %c0_i32_0 = arith.constant 0 : i32
    return %arg0, %c0_i32 : i32, i32
  }
  func.func @transform_1(%arg0: i32) -> (i32, i32) {
    %c0_i32 = arith.constant 0 : i32
    %c0_i32_0 = arith.constant 0 : i32
    %c0_i32_1 = arith.constant 0 : i32
    return %c0_i32, %c0_i32_0 : i32, i32
  }
  func.func @transform_2(%arg0: i32) -> (i32, i32) {
    %c0_i32 = arith.constant 0 : i32
    %c0_i32_0 = arith.constant 0 : i32
    %c0_i32_1 = arith.constant 0 : i32
    return %c0_i32, %c0_i32_0 : i32, i32
  }
  func.func @transform_3(%arg0: i32) -> (i32, i32) {
    %c0_i32 = arith.constant 0 : i32
    %c0_i32_0 = arith.constant 0 : i32
    %c0_i32_1 = arith.constant 0 : i32
    return %c0_i32, %c0_i32_0 : i32, i32
  }
  func.func @transform_4(%arg0: i32) -> (i32, i32) {
    %c0_i32 = arith.constant 0 : i32
    %c0_i32_0 = arith.constant 0 : i32
    %c0_i32_1 = arith.constant 0 : i32
    return %c0_i32, %c0_i32_0 : i32, i32
  }
  func.func @transform_5(%arg0: i32) -> (i32, i32) {
    %c0_i32 = arith.constant 0 : i32
    %c0_i32_0 = arith.constant 0 : i32
    %c0_i32_1 = arith.constant 0 : i32
    return %c0_i32, %c0_i32_0 : i32, i32
  }
  func.func @transform_6(%arg0: i32) -> (i32, i32) {
    %c0_i32 = arith.constant 0 : i32
    %c0_i32_0 = arith.constant 0 : i32
    %c0_i32_1 = arith.constant 0 : i32
    return %c0_i32, %c0_i32_0 : i32, i32
  }
  func.func @transform_7(%arg0: i32) -> (i32, i32) {
    %c0_i32 = arith.constant 0 : i32
    %c0_i32_0 = arith.constant 0 : i32
    return %arg0, %c0_i32 : i32, i32
  }
}

</mosaic_0001>

<llo_original>
// kernel: tpu_custom_call.1
$region0: #{tpu_custom_call.1}
  #allocation0 [shape = 'u32[]', space=smem, size = 0x4, offset = 0x4, fixed_abs, tag = 'smem constant byte address 0x4 - core index']
  #allocation1 [shape = 'u32[144,128]{1,0:T(1,128)}', space=vmem, size = 0x12000, scoped, tag = 'internal scratch']
  %s0 = inlined_call_operand.vmem [shape: f32[8,16], index: 0, kind: input, shape index: {}]
  %s1 = inlined_call_operand.vmem [shape: bf16[16,64], index: 1, kind: input, shape index: {}]
  %s2 = inlined_call_operand.vmem [shape: f32[1,64], index: 2, kind: input, shape index: {}]
  %s3 = inlined_call_operand.vmem [shape: bf16[64,16], index: 3, kind: input, shape index: {}]
  %s4 = inlined_call_operand.vmem [shape: f32[1,16], index: 4, kind: input, shape index: {}]
  %s5 = inlined_call_operand.vmem [shape: bf16[16,8], index: 5, kind: input, shape index: {}]
  %s6 = inlined_call_operand.vmem [shape: f32[1,8], index: 6, kind: input, shape index: {}]
  %s7 = inlined_call_operand.hbm [shape: bf16[8,8], index: 7, kind: output, shape index: {}]
  %s8 = sld [smem:[#allocation0]]
  $region38: #{tpu_custom_call.1} parent=0
    _
  %s10 = ssub.s32 1, %s8
  %s11 = scalar_select 0, %s10, %s8
  $region1: #{tpu_custom_call.1} parent=0
    #allocation2 [shape = 'u8[2048]{0}', space=vmem, size = 0x800, scoped, tag = 'output window, operand 0, single buffered']
    #allocation3 [shape = 's32[1]{0}', space=sflag, size = 0x4, scoped, tag = 'scoped memory for tpu_custom_call.1']
    %12 = vsyncpa [#allocation3], 0
    // Predicated region
    $region2: #{tpu_custom_call.1} parent=1 // pred_check
      _
    $region3: #{tpu_custom_call.1} parent=1 // pred_check_branch
      %14 = sbr.rel (0) target = $region5
    $region4: #{tpu_custom_call.1} parent=1 // pred_region
      _
    $region5: #{tpu_custom_call.1} parent=1 // pred_fallthru
      _
    // Predicated region
    $region6: #{tpu_custom_call.1} parent=1 // pred_check
      _
    $region7: #{tpu_custom_call.1} parent=1 // pred_check_branch
      %16 = sbr.rel (0) target = $region9
    $region8: #{tpu_custom_call.1} parent=1 // pred_region
      _
    $region9: #{tpu_custom_call.1} parent=1 // pred_fallthru
      _
    // Predicated region
    $region10: #{tpu_custom_call.1} parent=1 // pred_check
      _
    $region11: #{tpu_custom_call.1} parent=1 // pred_check_branch
      %18 = sbr.rel (0) target = $region13
    $region12: #{tpu_custom_call.1} parent=1 // pred_region
      _
    $region13: #{tpu_custom_call.1} parent=1 // pred_fallthru
      _
    // Predicated region
    $region14: #{tpu_custom_call.1} parent=1 // pred_check
      _
    $region15: #{tpu_custom_call.1} parent=1 // pred_check_branch
      %20 = sbr.rel (0) target = $region17
    $region16: #{tpu_custom_call.1} parent=1 // pred_region
      _
    $region17: #{tpu_custom_call.1} parent=1 // pred_fallthru
      _
    // Predicated region
    $region18: #{tpu_custom_call.1} parent=1 // pred_check
      _
    $region19: #{tpu_custom_call.1} parent=1 // pred_check_branch
      %22 = sbr.rel (0) target = $region21
    $region20: #{tpu_custom_call.1} parent=1 // pred_region
      _
    $region21: #{tpu_custom_call.1} parent=1 // pred_fallthru
      _
    // Predicated region
    $region22: #{tpu_custom_call.1} parent=1 // pred_check
      _
    $region23: #{tpu_custom_call.1} parent=1 // pred_check_branch
      %24 = sbr.rel (0) target = $region25
    $region24: #{tpu_custom_call.1} parent=1 // pred_region
      _
    $region25: #{tpu_custom_call.1} parent=1 // pred_fallthru
      _
    // Predicated region
    $region26: #{tpu_custom_call.1} parent=1 // pred_check
      _
    $region27: #{tpu_custom_call.1} parent=1 // pred_check_branch
      %26 = sbr.rel (0) target = $region29
    $region28: #{tpu_custom_call.1} parent=1 // pred_region
      _
    $region29: #{tpu_custom_call.1} parent=1 // pred_fallthru
      _
    %v28 = vld [vmem:[%s0] sm:$0xff]
    %v29 = vpack.c.bf16 %v28, %v28
    %v30 = vld [vmem:[%s1] sm:$0xf]
    %v31 = vld [vmem:[%s1 + $0x4] sm:$0xf]
    %v32 = vld [vmem:[%s2] sm:$0x1]
    %v34 = vlaneseq
    %v35 = vshrl.u32 %v34, 7
    %v36 = vsub.s32 0, %v35
    %v37 = vrot.slane %v32, %v36
    %v41 = vunpack.c.l.b16 %v30
    %v42 = vunpack.c.l.b16 %v31
    %v43 = vpack.c.b16 %v42, %v41
    %vm45 = vcmask 130048
    %v47 = vsel %vm45, %v29, 0
    %49 = vmatprep.subr.bf16.mxu0 0
    %50 = vmatpush1.bf16.msra.mxu0 0
    %51 = vmatprep.subr.bf16.mxu0 0
    %52 = vmatpush1.bf16.msra.mxu0 0
    %53 = vmatprep.subr.bf16.mxu0 0
    %54 = vmatpush1.bf16.msra.mxu0 0
    %55 = vmatprep.subr.bf16.mxu0 0
    %56 = vmatpush1.bf16.msra.mxu0 0
    %57 = vmatprep.subr.bf16.mxu0 0
    %58 = vmatpush1.bf16.msra.mxu0 0
    %59 = vmatprep.subr.bf16.mxu0 0
    %60 = vmatpush1.bf16.msra.mxu0 0
    %61 = vmatprep.subr.bf16.mxu0 0
    %62 = vmatpush1.bf16.msra.mxu0 0
    %63 = vmatprep.subr.bf16.mxu0 0
    %64 = vmatpush1.bf16.msra.mxu0 %v43
    %65 = vmatprep.subr.bf16.mxu0 0
    %66 = vmatpush2.bf16.msra.mxu0 0
    %67 = vmatprep.subr.bf16.mxu0 0
    %68 = vmatpush2.bf16.msra.mxu0 0
    %69 = vmatprep.subr.bf16.mxu0 0
    %70 = vmatpush2.bf16.msra.mxu0 0
    %71 = vmatprep.subr.bf16.mxu0 0
    %72 = vmatpush2.bf16.msra.mxu0 0
    %73 = vmatprep.subr.bf16.mxu0 0
    %74 = vmatpush2.bf16.msra.mxu0 0
    %75 = vmatprep.subr.bf16.mxu0 0
    %76 = vmatpush2.bf16.msra.mxu0 0
    %77 = vmatprep.subr.bf16.mxu0 0
    %78 = vmatpush2.bf16.msra.mxu0 0
    %79 = vmatprep.subr.bf16.mxu0 0
    %80 = vmatpush2.bf16.msra.mxu0 0
    %81 = vmatprep.mubr.bf16.mxu0 0
    %82 = vmatmul.mubr.bf16.gmra.mxu0 %v47
    %v83 = vpop.f32.mrf.mxu0
    %v84 = vadd.f32 %v37, %v83
    %v85 = vpop.f32.mrf.mxu0
    %v86 = vpop.f32.mrf.mxu0
    %v87 = vpop.f32.mrf.mxu0
    %88 = vdwg.mxu0
    %v89 = vmax.f32 %v84, 0.0
    %v90 = vpack.c.bf16 %v89, %v89
    %v91 = vld [vmem:[%s3] sm:$0xf]
    %v92 = vld [vmem:[%s3 + $0x4] sm:$0xf]
    %v93 = vld [vmem:[%s3 + $0x8] sm:$0xf]
    %v94 = vld [vmem:[%s3 + $0xc] sm:$0xf]
    %v95 = vld [vmem:[%s3 + $0x10] sm:$0xf]
    %v96 = vld [vmem:[%s3 + $0x14] sm:$0xf]
    %v97 = vld [vmem:[%s3 + $0x18] sm:$0xf]
    %v98 = vld [vmem:[%s3 + $0x1c] sm:$0xf]
    %v99 = vld [vmem:[%s4] sm:$0x1]
    %v101 = vlaneseq
    %v102 = vshrl.u32 %v101, 7
    %v103 = vsub.s32 0, %v102
    %v104 = vrot.slane %v99, %v103
    %v114 = vunpack.c.l.b16 %v91
    %v115 = vunpack.c.l.b16 %v92
    %v116 = vunpack.c.l.b16 %v93
    %v117 = vunpack.c.l.b16 %v94
    %v118 = vunpack.c.l.b16 %v95
    %v119 = vunpack.c.l.b16 %v96
    %v120 = vunpack.c.l.b16 %v97
    %v121 = vunpack.c.l.b16 %v98
    %v122 = vpack.c.b16 %v115, %v114
    %v123 = vpack.c.b16 %v117, %v116
    %v124 = vpack.c.b16 %v119, %v118
    %v125 = vpack.c.b16 %v121, %v120
    %vm130 = vcmask 523264
    %v132 = vsel %vm130, %v90, 0
    %134 = vmatprep.subr.bf16.mxu0 0
    %135 = vmatpush1.bf16.msra.mxu0 0
    %136 = vmatprep.subr.bf16.mxu0 0
    %137 = vmatpush1.bf16.msra.mxu0 0
    %138 = vmatprep.subr.bf16.mxu0 0
    %139 = vmatpush1.bf16.msra.mxu0 0
    %140 = vmatprep.subr.bf16.mxu0 0
    %141 = vmatpush1.bf16.msra.mxu0 0
    %142 = vmatprep.subr.bf16.mxu0 0
    %143 = vmatpush1.bf16.msra.mxu0 %v125
    %144 = vmatprep.subr.bf16.mxu0 0
    %145 = vmatpush1.bf16.msra.mxu0 %v124
    %146 = vmatprep.subr.bf16.mxu0 0
    %147 = vmatpush1.bf16.msra.mxu0 %v123
    %148 = vmatprep.subr.bf16.mxu0 0
    %149 = vmatpush1.bf16.msra.mxu0 %v122
    %150 = vmatprep.subr.bf16.mxu0 0
    %151 = vmatpush2.bf16.msra.mxu0 0
    %152 = vmatprep.subr.bf16.mxu0 0
    %153 = vmatpush2.bf16.msra.mxu0 0
    %154 = vmatprep.subr.bf16.mxu0 0
    %155 = vmatpush2.bf16.msra.mxu0 0
    %156 = vmatprep.subr.bf16.mxu0 0
    %157 = vmatpush2.bf16.msra.mxu0 0
    %158 = vmatprep.subr.bf16.mxu0 0
    %159 = vmatpush2.bf16.msra.mxu0 0
    %160 = vmatprep.subr.bf16.mxu0 0
    %161 = vmatpush2.bf16.msra.mxu0 0
    %162 = vmatprep.subr.bf16.mxu0 0
    %163 = vmatpush2.bf16.msra.mxu0 0
    %164 = vmatprep.subr.bf16.mxu0 0
    %165 = vmatpush2.bf16.msra.mxu0 0
    %166 = vmatprep.mubr.bf16.mxu0 0
    %167 = vmatmul.mubr.bf16.gmra.mxu0 %v132
    %v168 = vpop.f32.mrf.mxu0
    %v169 = vadd.f32 %v104, %v168
    %v170 = vpop.f32.mrf.mxu0
    %v171 = vpop.f32.mrf.mxu0
    %v172 = vpop.f32.mrf.mxu0
    %173 = vdwg.mxu0
    %v174 = vmax.f32 %v169, 0.0
    %v175 = vpack.c.bf16 %v174, %v174
    %v176 = vld [vmem:[%s5] sm:$0xf]
    %v177 = vld [vmem:[%s5 + $0x4] sm:$0xf]
    %v178 = vld [vmem:[%s6] sm:$0x1]
    %v180 = vlaneseq
    %v181 = vshrl.u32 %v180, 7
    %v182 = vsub.s32 0, %v181
    %v183 = vrot.slane %v178, %v182
    %v187 = vunpack.c.l.b16 %v176
    %v188 = vunpack.c.l.b16 %v177
    %v189 = vpack.c.b16 %v188, %v187
    %v192 = vsel %vm45, %v175, 0
    %194 = vmatprep.subr.bf16.mxu0 0
    %195 = vmatpush1.bf16.msra.mxu0 0
    %196 = vmatprep.subr.bf16.mxu0 0
    %197 = vmatpush1.bf16.msra.mxu0 0
    %198 = vmatprep.subr.bf16.mxu0 0
    %199 = vmatpush1.bf16.msra.mxu0 0
    %200 = vmatprep.subr.bf16.mxu0 0
    %201 = vmatpush1.bf16.msra.mxu0 0
    %202 = vmatprep.subr.bf16.mxu0 0
    %203 = vmatpush1.bf16.msra.mxu0 0
    %204 = vmatprep.subr.bf16.mxu0 0
    %205 = vmatpush1.bf16.msra.mxu0 0
    %206 = vmatprep.subr.bf16.mxu0 0
    %207 = vmatpush1.bf16.msra.mxu0 0
    %208 = vmatprep.subr.bf16.mxu0 0
    %209 = vmatpush1.bf16.msra.mxu0 %v189
    %210 = vmatprep.subr.bf16.mxu0 0
    %211 = vmatpush2.bf16.msra.mxu0 0
    %212 = vmatprep.subr.bf16.mxu0 0
    %213 = vmatpush2.bf16.msra.mxu0 0
    %214 = vmatprep.subr.bf16.mxu0 0
    %215 = vmatpush2.bf16.msra.mxu0 0
    %216 = vmatprep.subr.bf16.mxu0 0
    %217 = vmatpush2.bf16.msra.mxu0 0
    %218 = vmatprep.subr.bf16.mxu0 0
    %219 = vmatpush2.bf16.msra.mxu0 0
    %220 = vmatprep.subr.bf16.mxu0 0
    %221 = vmatpush2.bf16.msra.mxu0 0
    %222 = vmatprep.subr.bf16.mxu0 0
    %223 = vmatpush2.bf16.msra.mxu0 0
    %224 = vmatprep.subr.bf16.mxu0 0
    %225 = vmatpush2.bf16.msra.mxu0 0
    %226 = vmatprep.mubr.bf16.mxu0 0
    %227 = vmatmul.mubr.bf16.gmra.mxu0 %v192
    %v228 = vpop.f32.mrf.mxu0
    %v229 = vadd.f32 %v183, %v228
    %v230 = vpop.f32.mrf.mxu0
    %v231 = vpop.f32.mrf.mxu0
    %v232 = vpop.f32.mrf.mxu0
    %233 = vdwg.mxu0
    %v234 = vmax.f32 %v229, 0.0
    %v235 = vpack.c.bf16 %v234, %v234
    %vm236 = vcmask 60416
    %237 = vst.msk [vmem:[#allocation2] sm:$0xf] %vm236, %v235
    // Predicated region
    $region30: #{tpu_custom_call.1} parent=1 // pred_check
      _
    $region31: #{tpu_custom_call.1} parent=1 // pred_check_branch
      %239 = sbr.rel (0) target = $region33
    $region32: #{tpu_custom_call.1} parent=1 // pred_region
      %s241 = ssub.s32 64, 64
      %242 = vsyncadd [#allocation3], %s241
      %s244 = sshll.u32 [#allocation2], 4
      %s245 = int_to_ptr.vmem [resolvable:$true] %s244
      %247 = dma.vmem_to_hbm [thread:$0]  %s245, 64, %s7, [#allocation3]
    $region33: #{tpu_custom_call.1} parent=1 // pred_fallthru
      _
    // Predicated region
    $region34: #{tpu_custom_call.1} parent=1 // pred_check
      _
    $region35: #{tpu_custom_call.1} parent=1 // pred_check_branch
      %249 = sbr.rel (0) target = $region37
    $region36: #{tpu_custom_call.1} parent=1 // pred_region
      %250 = dma.done [#allocation3], 64
    $region37: #{tpu_custom_call.1} parent=1 // pred_fallthru
      _
    %251 = vsyncpa [#allocation3], 1

</llo_original>
